<compile_context>
chip_gen: v7x
topology: tpu7x:2x2x1
jax: 0.10.0
libtpu: 0.0.40
codegen_flags: <defaults>
</compile_context>

<pallas_src>
import jax
import jax.numpy as jnp
from jax.experimental import pallas as pl
from jax.experimental.pallas import tpu as pltpu


def _span_loss_kernel(x_ref, s_ref, m_ref, out_ref):
    """One grid step: one batch element, one tile of L tokens.

    x_ref  : (C, TL) float  - cross-entropy "input" logits (pre mask-fill)
    s_ref  : (TL, C) float  - soft (probability) targets (the module's `logits`)
    m_ref  : (C, TL) int8   - mask (0 => fill input with -100)
    out_ref: (1, TL) f32    - per-token loss  -sum_c soft * log_softmax_c(x)
    """
    x = x_ref[...].astype(jnp.float32)

    # masked_fill(mask == 0, -100)
    mask_is_zero = m_ref[...].astype(jnp.float32) == jnp.float32(0.0)
    x = jnp.where(mask_is_zero, jnp.float32(-100.0), x)

    # numerically-stable log-sum-exp over the class (sublane) axis
    x_max = jnp.max(x, axis=0, keepdims=True)                              # (1, TL)
    lse = jnp.log(jnp.sum(jnp.exp(x - x_max), axis=0, keepdims=True)) + x_max

    # transpose the small soft-target tile in-kernel (rides the XLU slot)
    soft = s_ref[...].astype(jnp.float32).T                                # (C, TL)

    # -sum_c soft * log_softmax(x) == sum_c soft * (lse - x); single sublane reduce
    out_ref[...] = jnp.sum(soft * (lse - x), axis=0, keepdims=True)        # (1, TL)


def span_loss(target, logits, mask, *, tile_l=None,
              vmem_budget_bytes=12 * 1024 * 1024):
    """target: (B, C, L) float, logits: (B, L, C) float, mask: (B, C, L) int -> scalar f32."""
    B, C, L = target.shape
    assert logits.shape == (B, L, C), (logits.shape, (B, L, C))
    assert mask.shape == (B, C, L), (mask.shape, (B, C, L))

    # mask is only ever used as (mask == 0): ship 1 byte/elem instead of 4.
    mask = mask.astype(jnp.int8)

    # ---- choose the L-tile: as large as a conservative VMEM budget allows ----
    t_bytes = jnp.dtype(target.dtype).itemsize
    s_bytes = jnp.dtype(logits.dtype).itemsize
    # double-buffered inputs (target + logits + int8 mask) + ~6 f32 temps per element
    per_col = C * (2 * (t_bytes + s_bytes + 1) + 6 * 4) + 2 * 4
    max_cols = max(128, vmem_budget_bytes // per_col)
    if tile_l is None:
        if L <= max_cols:
            tile_l = L                                # single tile covers all of L
        else:
            tile_l = max(128, min((max_cols // 128) * 128, 4096))
    if tile_l < L and tile_l % 128 != 0:
        raise ValueError("tile_l must be a multiple of 128 when it does not cover L")

    n_tiles = -(-L // tile_l)
    l_pad = n_tiles * tile_l
    if l_pad != L:
        pad = l_pad - L
        # padded soft-targets are 0 => padded tokens contribute exactly 0 loss;
        # padded mask is 0 => padded x becomes -100 everywhere (finite log-softmax).
        target = jnp.pad(target, ((0, 0), (0, 0), (0, pad)))
        mask = jnp.pad(mask, ((0, 0), (0, 0), (0, pad)))
        logits = jnp.pad(logits, ((0, 0), (0, pad), (0, 0)))

    grid = (B, n_tiles)
    per_token = pl.pallas_call(
        _span_loss_kernel,
        out_shape=jax.ShapeDtypeStruct((B, 1, l_pad), jnp.float32),
        grid=grid,
        in_specs=[
            pl.BlockSpec((pl.Squeezed(), C, tile_l), lambda b, lt: (b, 0, lt)),   # target
            pl.BlockSpec((pl.Squeezed(), tile_l, C), lambda b, lt: (b, lt, 0)),   # logits
            pl.BlockSpec((pl.Squeezed(), C, tile_l), lambda b, lt: (b, 0, lt)),   # mask
        ],
        out_specs=pl.BlockSpec((pl.Squeezed(), 1, tile_l), lambda b, lt: (b, 0, lt)),
        compiler_params=pltpu.CompilerParams(
            dimension_semantics=("parallel", "parallel"),
            vmem_limit_bytes=32 * 1024 * 1024,
        ),
    )(target, logits, mask)

    # tiny final reduction + 'mean' over the B*L real tokens (padding contributes 0)
    return jnp.sum(per_token) / jnp.float32(B * L)


def _reference(target, logits, mask):
    """Pure-JAX reference of the literal PyTorch forward."""
    x = jnp.where(mask == 0, -100.0, target)               # (B, C, L)
    soft = jnp.transpose(logits, (0, 2, 1))                # (B, C, L)
    logp = jax.nn.log_softmax(x, axis=1)                   # softmax over class dim
    per_elem = -jnp.sum(soft * logp, axis=1)               # (B, L)
    return jnp.mean(per_elem)


if __name__ == "__main__":
    key = jax.random.PRNGKey(0)

    # --- test 1: small shapes, single L-tile -------------------------------
    B, C, L = 2, 8, 16
    k1, k2, k3, key = jax.random.split(key, 4)
    target = jax.random.normal(k1, (B, C, L), dtype=jnp.float32)
    logits = jax.nn.softmax(jax.random.normal(k2, (B, L, C), dtype=jnp.float32), axis=-1)
    mask = (jax.random.uniform(k3, (B, C, L)) > 0.3).astype(jnp.int32)

    loss = jax.block_until_ready(span_loss(target, logits, mask))
    ref = jax.block_until_ready(_reference(target, logits, mask))
    assert jnp.isfinite(loss), "non-finite loss"
    assert jnp.allclose(loss, ref, rtol=1e-5, atol=1e-5), (loss, ref)

    # --- test 2: forces L-tiling + padding path ----------------------------
    B2, C2, L2 = 2, 8, 200
    k4, k5, k6, key = jax.random.split(key, 4)
    target2 = jax.random.normal(k4, (B2, C2, L2), dtype=jnp.float32)
    logits2 = jax.nn.softmax(jax.random.normal(k5, (B2, L2, C2), dtype=jnp.float32), axis=-1)
    mask2 = (jax.random.uniform(k6, (B2, C2, L2)) > 0.3).astype(jnp.int32)

    loss2 = jax.block_until_ready(span_loss(target2, logits2, mask2, tile_l=128))
    ref2 = jax.block_until_ready(_reference(target2, logits2, mask2))
    assert jnp.isfinite(loss2), "non-finite loss (tiled)"
    assert jnp.allclose(loss2, ref2, rtol=1e-5, atol=1e-5), (loss2, ref2)

    print("KERNEL_OK")
</pallas_src>

<mosaic_0001>
module attributes {stable_mosaic.version = 11 : i64} {
  func.func @_span_loss_kernel(%arg0: i32, %arg1: i32, %arg2: memref<1x8x16xf32, #tpu.memory_space<vmem>>, %arg3: memref<1x16x8xf32, #tpu.memory_space<vmem>>, %arg4: memref<1x8x16xi8, #tpu.memory_space<vmem>>, %arg5: memref<1x1x16xf32, #tpu.memory_space<vmem>>) attributes {dimension_semantics = [#tpu.dimension_semantics<parallel>, #tpu.dimension_semantics<parallel>], iteration_bounds = array<i64: 2, 1>, scalar_prefetch = 0 : i64, scratch_operands = 0 : i64, tpu.core_type = #tpu.core_type<tc>, window_params = [{transform_indices = @transform_0, window_bounds = array<i64: 1, 8, 16>}, {transform_indices = @transform_1, window_bounds = array<i64: 1, 16, 8>}, {transform_indices = @transform_2, window_bounds = array<i64: 1, 8, 16>}, {transform_indices = @transform_3, window_bounds = array<i64: 1, 1, 16>}]} {
    %c0 = arith.constant 0 : index
    %c0_0 = arith.constant 0 : index
    %c0_1 = arith.constant 0 : index
    %0 = vector.load %arg2[%c0, %c0_0, %c0_1] : memref<1x8x16xf32, #tpu.memory_space<vmem>>, vector<1x8x16xf32>
    %1 = vector.shape_cast %0 : vector<1x8x16xf32> to vector<8x16xf32>
    %c0_2 = arith.constant 0 : index
    %c0_3 = arith.constant 0 : index
    %c0_4 = arith.constant 0 : index
    %2 = vector.load %arg4[%c0_2, %c0_3, %c0_4] : memref<1x8x16xi8, #tpu.memory_space<vmem>>, vector<1x8x16xi8>
    %3 = vector.shape_cast %2 : vector<1x8x16xi8> to vector<8x16xi8>
    %4 = arith.sitofp %3 : vector<8x16xi8> to vector<8x16xf32>
    %cst = arith.constant 0.000000e+00 : f32
    %5 = vector.broadcast %cst : f32 to vector<8x16xf32>
    %6 = arith.cmpf oeq, %4, %5 : vector<8x16xf32>
    %cst_5 = arith.constant -1.000000e+02 : f32
    %7 = vector.broadcast %cst_5 : f32 to vector<8x16xf32>
    %8 = arith.select %6, %7, %1 : vector<8x16xi1>, vector<8x16xf32>
    %cst_6 = arith.constant dense<0xFF800000> : vector<16xf32>
    %9 = vector.multi_reduction <maximumf>, %8, %cst_6 [0] : vector<8x16xf32> to vector<16xf32>
    %10 = vector.shape_cast %9 : vector<16xf32> to vector<1x16xf32>
    %11 = vector.broadcast %10 : vector<1x16xf32> to vector<8x16xf32>
    %12 = arith.subf %8, %11 : vector<8x16xf32>
    %13 = math.exp %12 : vector<8x16xf32>
    %cst_7 = arith.constant dense<0.000000e+00> : vector<16xf32>
    %14 = vector.multi_reduction <add>, %13, %cst_7 [0] : vector<8x16xf32> to vector<16xf32>
    %15 = vector.shape_cast %14 : vector<16xf32> to vector<1x16xf32>
    %16 = math.log %15 : vector<1x16xf32>
    %17 = arith.addf %16, %10 : vector<1x16xf32>
    %c0_8 = arith.constant 0 : index
    %c0_9 = arith.constant 0 : index
    %c0_10 = arith.constant 0 : index
    %18 = vector.load %arg3[%c0_8, %c0_9, %c0_10] : memref<1x16x8xf32, #tpu.memory_space<vmem>>, vector<1x16x8xf32>
    %19 = vector.shape_cast %18 : vector<1x16x8xf32> to vector<16x8xf32>
    %20 = tpu.transpose %19, [1, 0] : vector<16x8xf32> -> vector<8x16xf32>
    %21 = vector.broadcast %17 : vector<1x16xf32> to vector<8x16xf32>
    %22 = arith.subf %21, %8 : vector<8x16xf32>
    %23 = arith.mulf %20, %22 : vector<8x16xf32>
    %cst_11 = arith.constant dense<0.000000e+00> : vector<16xf32>
    %24 = vector.multi_reduction <add>, %23, %cst_11 [0] : vector<8x16xf32> to vector<16xf32>
    %25 = vector.shape_cast %24 : vector<16xf32> to vector<1x16xf32>
    %c0_12 = arith.constant 0 : index
    %c0_13 = arith.constant 0 : index
    %c0_14 = arith.constant 0 : index
    %26 = vector.load %arg5[%c0_12, %c0_13, %c0_14] : memref<1x1x16xf32, #tpu.memory_space<vmem>>, vector<1x1x16xf32>
    %27 = vector.shape_cast %26 : vector<1x1x16xf32> to vector<1x16xf32>
    %28 = vector.shape_cast %25 : vector<1x16xf32> to vector<1x1x16xf32>
    tpu.vector_store %arg5[%c0_12, %c0_13, %c0_14], %28 {strides = array<i32>} : memref<1x1x16xf32, #tpu.memory_space<vmem>>, vector<1x1x16xf32>,
    return
  }
  func.func @transform_0(%arg0: i32, %arg1: i32) -> (i32, i32, i32) {
    %c0_i32 = arith.constant 0 : i32
    %c0_i32_0 = arith.constant 0 : i32
    return %arg0, %c0_i32, %arg1 : i32, i32, i32
  }
  func.func @transform_1(%arg0: i32, %arg1: i32) -> (i32, i32, i32) {
    %c0_i32 = arith.constant 0 : i32
    %c0_i32_0 = arith.constant 0 : i32
    return %arg0, %arg1, %c0_i32 : i32, i32, i32
  }
  func.func @transform_2(%arg0: i32, %arg1: i32) -> (i32, i32, i32) {
    %c0_i32 = arith.constant 0 : i32
    %c0_i32_0 = arith.constant 0 : i32
    return %arg0, %c0_i32, %arg1 : i32, i32, i32
  }
  func.func @transform_3(%arg0: i32, %arg1: i32) -> (i32, i32, i32) {
    %c0_i32 = arith.constant 0 : i32
    %c0_i32_0 = arith.constant 0 : i32
    return %arg0, %c0_i32, %arg1 : i32, i32, i32
  }
}

</mosaic_0001>

<llo_original>
// kernel: tpu_custom_call.1
$region0: #{tpu_custom_call.1}
  #allocation0 [shape = 'u32[]', space=smem, size = 0x4, offset = 0x4, fixed_abs, tag = 'smem constant byte address 0x4 - core index']
  #allocation1 [shape = 'u32[144,128]{1,0:T(1,128)}', space=vmem, size = 0x12000, scoped, tag = 'internal scratch']
  %s0 = inlined_call_operand.vmem [shape: f32[2,8,16], index: 0, kind: input, shape index: {}]
  %s1 = inlined_call_operand.vmem [shape: f32[2,16,8], index: 1, kind: input, shape index: {}]
  %s2 = inlined_call_operand.vmem [shape: s8[2,8,16], index: 2, kind: input, shape index: {}]
  %s3 = inlined_call_operand.hbm [shape: f32[2,1,16], index: 3, kind: output, shape index: {}]
  %s4 = sld [smem:[#allocation0]]
  $region45: #{tpu_custom_call.1} parent=0
    _
  %s6 = ssub.s32 1, %s4
  %s7 = scalar_select 0, %s6, %s4
  $region1: #{tpu_custom_call.1} parent=0
    #allocation2 [shape = 'u8[1024]{0}', space=vmem, size = 0x400, scoped, tag = 'output window, operand 0']
    #allocation3 [shape = 's32[2]{0}', space=sflag, size = 0x8, scoped, tag = 'scoped memory for tpu_custom_call.1']
    %8 = vsyncpa [#allocation3], 0
    %s9 = scalar_lea.sflag [#allocation3], 1
    %10 = vsyncpa %s9, 0
    loop: start=0, step=1, limit=4
    $region2: #{tpu_custom_call.1} parent=1 // loop_pre_header
      _
    $region3: #{tpu_custom_call.1} parent=1 // loop_header
      %s12 = sphi 0, %s16
      %p13 = scmp.ge.s32.totalorder %s12, 4
      %s19 = sphi 0, %s31
      %s20 = sphi 0, %s27
      %s21 = sphi 0, %s19
      %s22 = sphi 0, %s20
      %s23 = sphi 0, %s21
      %s24 = sphi 0, %s22
      %s36 = sphi 0, %s38
      %s39 = sphi 0, %s36
      %s40 = sphi 0, %s39
      %s56 = sphi 0, %s40
      %s64 = sphi 0, %s66
      %s67 = sphi 0, %s64
      %s68 = sphi 0, %s67
      %s84 = sphi 0, %s68
      %s92 = sphi 0, %s94
      %s95 = sphi 0, %s92
      %s96 = sphi 0, %s95
      %s112 = sphi 0, %s96
      %s120 = sphi 0, %s122
      %s123 = sphi 0, %s120
      %s124 = sphi 0, %s123
      %s140 = sphi 0, %s124
    $region4: #{tpu_custom_call.1} parent=1 // loop_header_branch
      %15 = sbr.rel (%p13) target = $region8
    $region5: #{tpu_custom_call.1} parent=1 // loop_body
      %s17 = ssub.s32 %s12, 1
      %s18 = ssub.s32 %s12, 2
      %s25 = sadd.s32 1, %s20
      %p26 = scmp.ge.s32.totalorder %s25, 1
      %s27 = scalar_select %p26, 0, %s25
      %s28 = sadd.s32 1, %s19
      %s29 = scalar_select %p26, %s28, %s19
      %p30 = scmp.ge.s32.totalorder %s29, 2
      %s31 = scalar_select %p30, 0, %s29
      %s32 = ssub.s32 %s19, %s31
      %s33 = ssub.s32 %s20, %s27
      %s34 = sor.u32 %s32, %s33
      %p35 = scmp.eq.s32.totalorder %s34, 0
      %s37 = sadd.s32 %s36, 1
      %s38 = scalar_select %p35, %s36, %s37
      %p41 = pneg %p35
      %p42 = scmp.eq.s32.totalorder %s12, 1
      %p43 = por %p41, %p42
      %p44 = scmp.ne.s32.totalorder %s36, %s39
      %p45 = scmp.eq.s32.totalorder %s12, 0
      %p46 = por %p44, %p45
      %p47 = scmp.ne.s32.totalorder %s36, %s39
      %p48 = scmp.eq.s32.totalorder %s17, 1
      %p49 = por %p47, %p48
      %p50 = scmp.ne.s32.totalorder %s39, %s40
      %p51 = scmp.eq.s32.totalorder %s17, 0
      %p52 = por %p50, %p51
      %p53 = scmp.ne.s32.totalorder %s39, %s40
      %p54 = scmp.eq.s32.totalorder %s18, 1
      %p55 = por %p53, %p54
      %p57 = scmp.ne.s32.totalorder %s40, %s56
      %p58 = scmp.eq.s32.totalorder %s18, 0
      %p59 = por %p57, %p58
      %s60 = ssub.s32 %s19, %s31
      %s61 = ssub.s32 %s20, %s27
      %s62 = sor.u32 %s60, %s61
      %p63 = scmp.eq.s32.totalorder %s62, 0
      %s65 = sadd.s32 %s64, 1
      %s66 = scalar_select %p63, %s64, %s65
      %p69 = pneg %p63
      %p70 = scmp.eq.s32.totalorder %s12, 1
      %p71 = por %p69, %p70
      %p72 = scmp.ne.s32.totalorder %s64, %s67
      %p73 = scmp.eq.s32.totalorder %s12, 0
      %p74 = por %p72, %p73
      %p75 = scmp.ne.s32.totalorder %s64, %s67
      %p76 = scmp.eq.s32.totalorder %s17, 1
      %p77 = por %p75, %p76
      %p78 = scmp.ne.s32.totalorder %s67, %s68
      %p79 = scmp.eq.s32.totalorder %s17, 0
      %p80 = por %p78, %p79
      %p81 = scmp.ne.s32.totalorder %s67, %s68
      %p82 = scmp.eq.s32.totalorder %s18, 1
      %p83 = por %p81, %p82
      %p85 = scmp.ne.s32.totalorder %s68, %s84
      %p86 = scmp.eq.s32.totalorder %s18, 0
      %p87 = por %p85, %p86
      %s88 = ssub.s32 %s19, %s31
      %s89 = ssub.s32 %s20, %s27
      %s90 = sor.u32 %s88, %s89
      %p91 = scmp.eq.s32.totalorder %s90, 0
      %s93 = sadd.s32 %s92, 1
      %s94 = scalar_select %p91, %s92, %s93
      %p97 = pneg %p91
      %p98 = scmp.eq.s32.totalorder %s12, 1
      %p99 = por %p97, %p98
      %p100 = scmp.ne.s32.totalorder %s92, %s95
      %p101 = scmp.eq.s32.totalorder %s12, 0
      %p102 = por %p100, %p101
      %p103 = scmp.ne.s32.totalorder %s92, %s95
      %p104 = scmp.eq.s32.totalorder %s17, 1
      %p105 = por %p103, %p104
      %p106 = scmp.ne.s32.totalorder %s95, %s96
      %p107 = scmp.eq.s32.totalorder %s17, 0
      %p108 = por %p106, %p107
      %p109 = scmp.ne.s32.totalorder %s95, %s96
      %p110 = scmp.eq.s32.totalorder %s18, 1
      %p111 = por %p109, %p110
      %p113 = scmp.ne.s32.totalorder %s96, %s112
      %p114 = scmp.eq.s32.totalorder %s18, 0
      %p115 = por %p113, %p114
      %s116 = ssub.s32 %s19, %s31
      %s117 = ssub.s32 %s20, %s27
      %s118 = sor.u32 %s116, %s117
      %p119 = scmp.eq.s32.totalorder %s118, 0
      %s121 = sadd.s32 %s120, 1
      %s122 = scalar_select %p119, %s120, %s121
      %p125 = pneg %p119
      %p126 = scmp.eq.s32.totalorder %s12, 1
      %p127 = por %p125, %p126
      %p128 = scmp.ne.s32.totalorder %s120, %s123
      %p129 = scmp.eq.s32.totalorder %s12, 0
      %p130 = por %p128, %p129
      %p131 = scmp.ne.s32.totalorder %s120, %s123
      %p132 = scmp.eq.s32.totalorder %s17, 1
      %p133 = por %p131, %p132
      %p134 = scmp.ne.s32.totalorder %s123, %s124
      %p135 = scmp.eq.s32.totalorder %s17, 0
      %p136 = por %p134, %p135
      %p137 = scmp.ne.s32.totalorder %s123, %s124
      %p138 = scmp.eq.s32.totalorder %s18, 1
      %p139 = por %p137, %p138
      %p141 = scmp.ne.s32.totalorder %s124, %s140
      %p142 = scmp.eq.s32.totalorder %s18, 0
      %p143 = por %p141, %p142
      %p144 = scmp.le.s32.totalorder 1, %s12
      %p145 = scmp.lt.s32.totalorder %s12, 3
      %p146 = pnand %p144, %p145
      %p147 = pneg %p146
      // Predicated region
      $region9: #{tpu_custom_call.1} parent=5 // pred_check
        _
      $region10: #{tpu_custom_call.1} parent=5 // pred_check_branch
        %149 = sbr.rel (%p146) target = $region12
      $region11: #{tpu_custom_call.1} parent=5 // pred_region
        %s150 = ssub.s32 %s12, 1
      $region12: #{tpu_custom_call.1} parent=5 // pred_fallthru
        _
      %p151 = scmp.lt.s32.totalorder %s12, 2
      // Predicated region
      $region13: #{tpu_custom_call.1} parent=5 // pred_check
        %p152 = pneg %p151
      $region14: #{tpu_custom_call.1} parent=5 // pred_check_branch
        %154 = sbr.rel (%p152) target = $region16
      $region15: #{tpu_custom_call.1} parent=5 // pred_region
        // Predicated region
        $region17: #{tpu_custom_call.1} parent=15 // pred_check
          %p155 = pneg %p46
        $region18: #{tpu_custom_call.1} parent=15 // pred_check_branch
          %157 = sbr.rel (%p155) target = $region20
        $region19: #{tpu_custom_call.1} parent=15 // pred_region
          %p158 = scmp.lt.s32.totalorder %s19, 1
          %s159 = scalar_select %p158, %s19, 1
          %p160 = scmp.lt.s32.totalorder %s20, 0
          %s161 = scalar_select %p160, %s20, 0
          %s162 = sadd.s32 %s161, %s159
          %s163 = smul.addr %s162, 8
          %s164 = scalar_lea.vmem %s0, %s163
        $region20: #{tpu_custom_call.1} parent=15 // pred_fallthru
          _
        // Predicated region
        $region21: #{tpu_custom_call.1} parent=15 // pred_check
          %p165 = pneg %p74
        $region22: #{tpu_custom_call.1} parent=15 // pred_check_branch
          %167 = sbr.rel (%p165) target = $region24
        $region23: #{tpu_custom_call.1} parent=15 // pred_region
          %s168 = smul.u32 2, %s20
          %p169 = scmp.lt.s32.totalorder %s19, 1
          %s170 = scalar_select %p169, %s19, 1
          %p171 = scmp.lt.s32.totalorder %s168, 1
          %s172 = scalar_select %p171, %s168, 1
          %s173 = smul.addr %s170, 2
          %s174 = sadd.s32 %s172, %s173
          %s175 = smul.addr %s174, 8
          %s176 = scalar_lea.vmem %s1, %s175
          %s177 = smul.u32 2, %s20
        $region24: #{tpu_custom_call.1} parent=15 // pred_fallthru
          _
        // Predicated region
        $region25: #{tpu_custom_call.1} parent=15 // pred_check
          %p178 = pneg %p102
        $region26: #{tpu_custom_call.1} parent=15 // pred_check_branch
          %180 = sbr.rel (%p178) target = $region28
        $region27: #{tpu_custom_call.1} parent=15 // pred_region
          %p181 = scmp.lt.s32.totalorder %s19, 1
          %s182 = scalar_select %p181, %s19, 1
          %p183 = scmp.lt.s32.totalorder %s20, 0
          %s184 = scalar_select %p183, %s20, 0
          %s185 = sadd.s32 %s184, %s182
          %s186 = smul.addr %s185, 2
          %s187 = scalar_lea.vmem %s2, %s186
        $region28: #{tpu_custom_call.1} parent=15 // pred_fallthru
          _
      $region16: #{tpu_custom_call.1} parent=5 // pred_fallthru
        _
      %p188 = scmp.le.s32.totalorder 1, %s12
      %p189 = scmp.lt.s32.totalorder %s12, 3
      %p190 = pnand %p188, %p189
      %p191 = pneg %p190
      // Predicated region
      $region29: #{tpu_custom_call.1} parent=5 // pred_check
        _
      $region30: #{tpu_custom_call.1} parent=5 // pred_check_branch
        %193 = sbr.rel (%p190) target = $region32
      $region31: #{tpu_custom_call.1} parent=5 // pred_region
        %s194 = ssub.s32 %s12, 1
        %p195 = scmp.lt.s32.totalorder %s21, 1
        %s196 = scalar_select %p195, %s21, 1
        %p197 = scmp.lt.s32.totalorder %s22, 0
        %s198 = scalar_select %p197, %s22, 0
        %s199 = sadd.s32 %s198, %s196
        %s200 = smul.addr %s199, 8
        %s201 = scalar_lea.vmem %s0, %s200
        %p202 = pneg %p52
        %p203 = pneg %p49
        %s204 = smul.u32 2, %s22
        %p205 = scmp.lt.s32.totalorder %s21, 1
        %s206 = scalar_select %p205, %s21, 1
        %p207 = scmp.lt.s32.totalorder %s204, 1
        %s208 = scalar_select %p207, %s204, 1
        %s209 = smul.addr %s206, 2
        %s210 = sadd.s32 %s208, %s209
        %s211 = smul.addr %s210, 8
        %s212 = scalar_lea.vmem %s1, %s211
        %p213 = pneg %p80
        %p214 = pneg %p77
        %p215 = scmp.lt.s32.totalorder %s21, 1
        %s216 = scalar_select %p215, %s21, 1
        %p217 = scmp.lt.s32.totalorder %s22, 0
        %s218 = scalar_select %p217, %s22, 0
        %s219 = sadd.s32 %s218, %s216
        %s220 = smul.addr %s219, 2
        %s221 = scalar_lea.vmem %s2, %s220
        %p222 = pneg %p108
        %p223 = pneg %p105
        %p224 = pneg %p136
        %p225 = pneg %p133
        %s226 = sand.u32 %s123, 1
        %s227 = scalar_lea.sflag [#allocation3], %s226
        %s228 = sand.u32 %s123, 1
        %s229 = scalar_lea.vmem [#allocation2], %s228
        %p230 = scmp.lt.s32.totalorder %s21, 1
        %s231 = scalar_select %p230, %s21, 1
        %p232 = scmp.lt.s32.totalorder %s22, 0
        %s233 = scalar_select %p232, %s22, 0
        %s234 = sadd.s32 %s233, %s231
        %s235 = smul.addr %s234, 8
        %s236 = scalar_lea.vmem %s0, %s235
        %s237 = smul.u32 2, %s22
        %p238 = scmp.lt.s32.totalorder %s21, 1
        %s239 = scalar_select %p238, %s21, 1
        %p240 = scmp.lt.s32.totalorder %s237, 1
        %s241 = scalar_select %p240, %s237, 1
        %s242 = smul.addr %s239, 2
        %s243 = sadd.s32 %s241, %s242
        %s244 = smul.addr %s243, 8
        %s245 = scalar_lea.vmem %s1, %s244
        %s246 = smul.u32 2, %s22
        %p247 = scmp.lt.s32.totalorder %s21, 1
        %s248 = scalar_select %p247, %s21, 1
        %p249 = scmp.lt.s32.totalorder %s22, 0
        %s250 = scalar_select %p249, %s22, 0
        %s251 = sadd.s32 %s250, %s248
        %s252 = smul.addr %s251, 2
        %s253 = scalar_lea.vmem %s2, %s252
        %v254 = vld [vmem:[%s236] sm:$0xff]
        %v255 = vld [vmem:[%s253] sm:$0x3]
        %v256 = vunpack.c.0.s8 %v255
        %v257 = vcvt.s32.f32 %v256
        %vm258 = vcmp.eq.f32.partialorder %v257, 0.0
        %v259 = vsel %vm258, -100.0, %v254
        %vm260 = vcmask 130048
        %v261 = vsel %vm260, %v259, -inf
        %v262 = vrot.slane %v261, 4
        %v263 = vmax.f32 %v261, %v262
        %v264 = vrot.slane %v263, 2
        %v265 = vmax.f32 %v263, %v264
        %v266 = vrot.slane %v265, 1
        %v267 = vmax.f32 %v265, %v266
        %v268 = vsub.f32 %v259, %v267
        %v269 = vmul.f32 %v268, 1.442695
        %v270 = vpow.pop %v269
        %v271 = vsel %vm260, %v270, 0.0
        %v272 = vrot.slane %v271, 4
        %v273 = vadd.f32 %v271, %v272
        %v274 = vrot.slane %v273, 2
        %v275 = vadd.f32 %v273, %v274
        %v276 = vrot.slane %v275, 1
        %v277 = vadd.f32 %v275, %v276
        %v278 = vlog2.pop %v277
        %v279 = vmul.f32 %v278, 0.6931472
        %v280 = vadd.f32 %v279, %v267
        %v281 = vld [vmem:[%s245] sm:$0xff]
        %v282 = vld [vmem:[%s245 + $0x8] sm:$0xff]
        %283 = vxpose.xlu0.b32.start [1/16] %v281, 128
        %284 = vxpose.xlu0.b32.cont [2/16] %v282, 128
        %285 = vxpose.xlu0.b32.cont [3/16] 0.0, 128
        %286 = vxpose.xlu0.b32.cont [4/16] 0.0, 128
        %287 = vxpose.xlu0.b32.cont [5/16] 0.0, 128
        %288 = vxpose.xlu0.b32.cont [6/16] 0.0, 128
        %289 = vxpose.xlu0.b32.cont [7/16] 0.0, 128
        %290 = vxpose.xlu0.b32.cont [8/16] 0.0, 128
        %291 = vxpose.xlu0.b32.cont [9/16] 0.0, 128
        %292 = vxpose.xlu0.b32.cont [10/16] 0.0, 128
        %293 = vxpose.xlu0.b32.cont [11/16] 0.0, 128
        %294 = vxpose.xlu0.b32.cont [12/16] 0.0, 128
        %295 = vxpose.xlu0.b32.cont [13/16] 0.0, 128
        %296 = vxpose.xlu0.b32.cont [14/16] 0.0, 128
        %297 = vxpose.xlu0.b32.cont [15/16] 0.0, 128
        %298 = vxpose.xlu0.b32.end [16/16] 0.0, 128
        %v299 = vpop.trf.xlu0
        %v300 = vpop.trf.xlu0
        %v301 = vpop.trf.xlu0
        %v302 = vpop.trf.xlu0
        %v303 = vpop.trf.xlu0
        %v304 = vpop.trf.xlu0
        %v305 = vpop.trf.xlu0
        %v306 = vpop.trf.xlu0
        %v307 = vpop.trf.xlu0
        %v308 = vpop.trf.xlu0
        %v309 = vpop.trf.xlu0
        %v310 = vpop.trf.xlu0
        %v311 = vpop.trf.xlu0
        %v312 = vpop.trf.xlu0
        %v313 = vpop.trf.xlu0
        %v314 = vpop.trf.xlu0
        %v315 = vsub.f32 %v280, %v259
        %v316 = vmul.f32 %v299, %v315
        %v317 = vsel %vm260, %v316, 0.0
        %v318 = vrot.slane %v317, 4
        %v319 = vadd.f32 %v317, %v318
        %v320 = vrot.slane %v319, 2
        %v321 = vadd.f32 %v319, %v320
        %v322 = vrot.slane %v321, 1
        %v323 = vadd.f32 %v321, %v322
        %vm324 = vcmask 122880
        %325 = vst.msk [vmem:[%s229] sm:$0x1] %vm324, %v323
        %s326 = sand.u32 %s123, 1
        %s327 = scalar_lea.sflag [#allocation3], %s326
        %s328 = sand.u32 %s123, 1
        %s329 = scalar_lea.vmem [#allocation2], %s328
        // Predicated region
        $region33: #{tpu_custom_call.1} parent=31 // pred_check
          %p330 = pneg %p133
        $region34: #{tpu_custom_call.1} parent=31 // pred_check_branch
          %332 = sbr.rel (%p330) target = $region36
        $region35: #{tpu_custom_call.1} parent=31 // pred_region
          %s334 = ssub.s32 16, 16
          %335 = vsyncadd %s327, %s334
          %s336 = sadd.s32 %s22, %s21
          %s337 = smul.addr %s336, 16
          %s338 = scalar_lea.hbm %s3, %s337
          %s340 = sshll.u32 %s329, 4
          %s341 = int_to_ptr.vmem [resolvable:$true] %s340
          %343 = dma.vmem_to_hbm [thread:$0]  %s341, 16, %s338, %s327
        $region36: #{tpu_custom_call.1} parent=31 // pred_fallthru
          _
      $region32: #{tpu_custom_call.1} parent=5 // pred_fallthru
        _
      %p344 = scmp.le.s32.totalorder 2, %s12
      // Predicated region
      $region37: #{tpu_custom_call.1} parent=5 // pred_check
        %p345 = pneg %p344
      $region38: #{tpu_custom_call.1} parent=5 // pred_check_branch
        %347 = sbr.rel (%p345) target = $region40
      $region39: #{tpu_custom_call.1} parent=5 // pred_region
        %s348 = ssub.s32 %s12, 2
        // Predicated region
        $region41: #{tpu_custom_call.1} parent=39 // pred_check
          %p349 = pneg %p139
        $region42: #{tpu_custom_call.1} parent=39 // pred_check_branch
          %351 = sbr.rel (%p349) target = $region44
        $region43: #{tpu_custom_call.1} parent=39 // pred_region
          %s352 = sand.u32 %s124, 1
          %s353 = scalar_lea.sflag [#allocation3], %s352
          %s354 = sand.u32 %s124, 1
          %s355 = scalar_lea.vmem [#allocation2], %s354
          %356 = dma.done %s353, 16
        $region44: #{tpu_custom_call.1} parent=39 // pred_fallthru
          _
      $region40: #{tpu_custom_call.1} parent=5 // pred_fallthru
        _
    $region6: #{tpu_custom_call.1} parent=1 // loop_footer
      %s16 = sadd.s32 1, %s12
    $region7: #{tpu_custom_call.1} parent=1 // loop_footer_branch
      %11 = sbr.rel target = $region3
    $region8: #{tpu_custom_call.1} parent=1 // loop_exit
      _
    %357 = vsyncpa [#allocation3], 1
    %s358 = scalar_lea.sflag [#allocation3], 1
    %359 = vsyncpa %s358, 1

</llo_original>
